<compile_context>
chip_gen: v7x
topology: tpu7x:2x2x1
jax: 0.10.0
libtpu: 0.0.40
codegen_flags: <defaults>
</compile_context>

<pallas_src>
import functools

import jax
import jax.numpy as jnp
from jax.experimental import pallas as pl
from jax.experimental.pallas import tpu as pltpu

BN_EPS = 1e-5
_BIG = 3.0e38          # finite "-inf" sentinel for empty groups (no NaNs if a == 0)
_GROUP_CHUNK = 8       # sublane-sized group chunk for the segment-max select
_GATHER_CHUNK = 128    # lane-sized group chunk for the one-hot gather matmul
_POINT_TILE = 512      # lane-dense point tile (multiple of 128)


def _round_up(v, m):
    return (v + m - 1) // m * m


def _vfe_pass1_kernel(x_ref, gid_ref, w_ref, sgn_ref,
                      sum_ref, sumsq_ref, segq_ref, *, gp, gc):
    """BN statistics + sign-folded segment max, accumulated over point tiles."""
    i = pl.program_id(0)

    @pl.when(i == 0)
    def _init():
        sum_ref[...] = jnp.zeros_like(sum_ref)
        sumsq_ref[...] = jnp.zeros_like(sumsq_ref)
        segq_ref[...] = jnp.full_like(segq_ref, -_BIG)

    # Conv1d(kernel_size=1) == channel matmul (MXU). Bias omitted (BN cancels it).
    z = jnp.dot(w_ref[...], x_ref[...], preferred_element_type=jnp.float32)  # (Ch, TN)
    gid = gid_ref[...]                                                        # (1, TN)

    sum_ref[...] += jnp.sum(z, axis=-1, keepdims=True)
    sumsq_ref[...] += jnp.sum(z * z, axis=-1, keepdims=True)

    # Fold the (runtime) sign of gamma into z so a single segment MAX recovers the
    # segment max (gamma >= 0) or segment min (gamma < 0) that BN+ReLU+scatter_max
    # needs. This halves the dominant masked-select work.
    zq = z * sgn_ref[...]                                                     # (Ch, TN)
    tn = zq.shape[-1]

    @pl.loop(0, gp // gc)
    def _chunk(c):
        g0 = pl.multiple_of(c * gc, gc)
        giota = jax.lax.broadcasted_iota(jnp.int32, (gc, tn), 0) + g0         # (gc, TN)
        mask = giota == gid                                                   # (gc, TN)
        cand = jnp.where(mask[:, None, :], zq[None, :, :], -_BIG)             # (gc, Ch, TN)
        cmax = jnp.max(cand, axis=-1)                                         # (gc, Ch)
        cur = segq_ref[pl.ds(g0, gc), :]
        segq_ref[pl.ds(g0, gc), :] = jnp.maximum(cur, cmax)


def _vfe_pass2_kernel(x_ref, gid_ref, w_ref, a_ref, bsh_ref, tbl_ref, out_ref,
                      *, gp, gk, ch):
    """out0 = ReLU(a*z + bsh) and out1 = gathered per-group max; two slice stores."""
    z = jnp.dot(w_ref[...], x_ref[...], preferred_element_type=jnp.float32)   # (Ch, TN)
    out0 = jnp.maximum(a_ref[...] * z + bsh_ref[...], 0.0)                    # (Ch, TN)
    out_ref[:ch, :] = out0                                                    # no concat copy

    gid = gid_ref[...]                                                        # (1, TN)
    tn = out0.shape[-1]

    def gather_chunk(k, acc):
        g0 = pl.multiple_of(k * gk, gk)
        giota = jax.lax.broadcasted_iota(jnp.int32, (gk, tn), 0) + g0
        onehot = (giota == gid).astype(jnp.float32)                           # (gk, TN)
        return acc + jnp.dot(tbl_ref[:, pl.ds(g0, gk)], onehot,
                             preferred_element_type=jnp.float32)

    out1 = jax.lax.fori_loop(0, gp // gk, gather_chunk, jnp.zeros_like(out0))
    out_ref[ch:, :] = out1


def vfe_forward(x, group_ids, grid_num, w, gamma, beta,
                *, eps=BN_EPS, point_tile=_POINT_TILE):
    """x: (in_ch, N) f32, group_ids: (N,) int, w: (ch, in_ch), gamma/beta: (ch,).

    Returns (2*ch, N) f32. The Conv1d bias is intentionally omitted: BatchNorm's
    per-channel mean subtraction cancels it exactly.
    """
    in_ch, n = x.shape
    ch = int(w.shape[0])

    n_pad = _round_up(n, point_tile)
    gp = _round_up(max(int(grid_num), _GATHER_CHUNK), _GATHER_CHUNK)
    nt = n_pad // point_tile

    # Pad points: x with zeros (z = 0 exactly -> stats unaffected, true N divisor),
    # group ids with -1 (never matches a group -> excluded from the segment max).
    x_p = jnp.pad(x.astype(jnp.float32), ((0, 0), (0, n_pad - n)))
    gid_p = jnp.pad(group_ids.astype(jnp.int32), (0, n_pad - n),
                    constant_values=-1).reshape(1, n_pad)
    w = w.astype(jnp.float32)
    gamma2 = gamma.astype(jnp.float32).reshape(ch, 1)
    beta2 = beta.astype(jnp.float32).reshape(ch, 1)
    sgn = jnp.where(gamma2 >= 0, 1.0, -1.0).astype(jnp.float32)

    x_spec = pl.BlockSpec((in_ch, point_tile), lambda i: (0, i))
    gid_spec = pl.BlockSpec((1, point_tile), lambda i: (0, i))
    full = lambda shape: pl.BlockSpec(shape, lambda i: (0, 0))

    # ---- pass 1: BN statistics + sign-folded segment max ----
    ssum, ssq, segq = pl.pallas_call(
        functools.partial(_vfe_pass1_kernel, gp=gp, gc=_GROUP_CHUNK),
        grid=(nt,),
        in_specs=[x_spec, gid_spec, full((ch, in_ch)), full((ch, 1))],
        out_specs=(full((ch, 1)), full((ch, 1)), full((gp, ch))),
        out_shape=(jax.ShapeDtypeStruct((ch, 1), jnp.float32),
                   jax.ShapeDtypeStruct((ch, 1), jnp.float32),
                   jax.ShapeDtypeStruct((gp, ch), jnp.float32)),
        compiler_params=pltpu.CompilerParams(dimension_semantics=("arbitrary",)),
    )(x_p, gid_p, w, sgn)

    # ---- tiny O(ch*gp) glue in plain JAX ----
    n_f = jnp.float32(n)                             # true point count
    mean = ssum / n_f
    var = jnp.maximum(ssq / n_f - mean * mean, 0.0)
    a = gamma2 * jax.lax.rsqrt(var + eps)            # (ch, 1)
    bsh = beta2 - a * mean                           # (ch, 1)
    ext = segq * sgn.T                               # (gp, ch): per-group max/min of z
    tbl = jnp.maximum(ext * a.T + bsh.T, 0.0).T      # (ch, gp); empty groups never gathered

    # ---- pass 2: BN+ReLU output + gather-back, tiled & "parallel" ----
    out = pl.pallas_call(
        functools.partial(_vfe_pass2_kernel, gp=gp, gk=_GATHER_CHUNK, ch=ch),
        grid=(nt,),
        in_specs=[x_spec, gid_spec, full((ch, in_ch)), full((ch, 1)),
                  full((ch, 1)), full((ch, gp))],
        out_specs=pl.BlockSpec((2 * ch, point_tile), lambda i: (0, i)),
        out_shape=jax.ShapeDtypeStruct((2 * ch, n_pad), jnp.float32),
        compiler_params=pltpu.CompilerParams(dimension_semantics=("parallel",)),
    )(x_p, gid_p, w, a, bsh, tbl)

    return out[:, :n]


def vfe_reference(x, group_ids, grid_num, w, b, gamma, beta, eps=BN_EPS):
    """Pure-JAX reference mirroring the PyTorch module (including the conv bias)."""
    z = w @ x + b.reshape(-1, 1)
    mu = z.mean(axis=1, keepdims=True)
    var = ((z - mu) ** 2).mean(axis=1, keepdims=True)
    out0 = jnp.maximum(gamma.reshape(-1, 1) * (z - mu) / jnp.sqrt(var + eps)
                       + beta.reshape(-1, 1), 0.0)
    seg = jax.ops.segment_max(out0.T, group_ids, num_segments=int(grid_num))  # (G, Ch)
    s_out = jnp.maximum(seg.T, 0.0)                  # scatter_max fill_value = 0
    out1 = s_out[:, group_ids]
    return jnp.concatenate([out0, out1], axis=0)


if __name__ == "__main__":
    # Shapes consistent with PointPillarsSem.vfe_0: in_ch = 16 + 2, out_ch = 32.
    in_ch = 18
    out_ch = 32
    ch = out_ch // 2
    n_points = 2000      # not a multiple of the 512-lane tile -> exercises padding
    grid_num = 100       # number of pillars (padded to 128 inside the kernel)

    key = jax.random.PRNGKey(0)
    k_x, k_g, k_w, k_b, k_gm, k_bt = jax.random.split(key, 6)

    x = jax.random.normal(k_x, (in_ch, n_points), dtype=jnp.float32)
    group_ids = jax.random.randint(k_g, (n_points,), 0, grid_num, dtype=jnp.int32)

    # Conv1d weight (ch, in_ch, 1) squeezed to (ch, in_ch); bias only feeds the reference.
    w = jax.random.normal(k_w, (ch, in_ch), dtype=jnp.float32) * 0.5
    b = jax.random.normal(k_b, (ch,), dtype=jnp.float32) * 0.1
    gamma = 1.0 + 0.1 * jax.random.normal(k_gm, (ch,), dtype=jnp.float32)
    gamma = gamma * jnp.where(jnp.arange(ch) % 4 == 0, -1.0, 1.0)  # exercise gamma < 0
    beta = 0.1 * jax.random.normal(k_bt, (ch,), dtype=jnp.float32)

    out = vfe_forward(x, group_ids, grid_num, w, gamma, beta)
    out = jax.block_until_ready(out)

    ref = vfe_reference(x, group_ids, grid_num, w, b, gamma, beta)
    assert out.shape == (out_ch, n_points), out.shape
    assert jnp.allclose(out, ref, atol=1e-4, rtol=1e-4), "mismatch vs reference"

    print("KERNEL_OK")
</pallas_src>

<mosaic_0001>
module attributes {stable_mosaic.version = 11 : i64} {
  func.func @_vfe_pass1_kernel(%arg0: i32, %arg1: memref<18x512xf32, #tpu.memory_space<vmem>>, %arg2: memref<1x512xi32, #tpu.memory_space<vmem>>, %arg3: memref<16x18xf32, #tpu.memory_space<vmem>>, %arg4: memref<16x1xf32, #tpu.memory_space<vmem>>, %arg5: memref<16x1xf32, #tpu.memory_space<vmem>>, %arg6: memref<16x1xf32, #tpu.memory_space<vmem>>, %arg7: memref<128x16xf32, #tpu.memory_space<vmem>>) attributes {dimension_semantics = [#tpu.dimension_semantics<arbitrary>], iteration_bounds = array<i64: 4>, scalar_prefetch = 0 : i64, scratch_operands = 0 : i64, tpu.core_type = #tpu.core_type<tc>, window_params = [{transform_indices = @transform_0, window_bounds = array<i64: 18, 512>}, {transform_indices = @transform_1, window_bounds = array<i64: 1, 512>}, {pipeline_mode = #tpu.pipeline_mode<synchronous>, transform_indices = @transform_2, window_bounds = array<i64: 16, 18>}, {pipeline_mode = #tpu.pipeline_mode<synchronous>, transform_indices = @transform_3, window_bounds = array<i64: 16, 1>}, {pipeline_mode = #tpu.pipeline_mode<synchronous>, transform_indices = @transform_4, window_bounds = array<i64: 16, 1>}, {pipeline_mode = #tpu.pipeline_mode<synchronous>, transform_indices = @transform_5, window_bounds = array<i64: 16, 1>}, {pipeline_mode = #tpu.pipeline_mode<synchronous>, transform_indices = @transform_6, window_bounds = array<i64: 128, 16>}]} {
    %c0_i32 = arith.constant 0 : i32
    %0 = arith.cmpi eq, %arg0, %c0_i32 : i32
    %1 = arith.extui %0 : i1 to i32
    %c0_i32_0 = arith.constant 0 : i32
    %2 = arith.cmpi ne, %1, %c0_i32_0 : i32
    scf.if %2 {
      %cst_20 = arith.constant 0.000000e+00 : f32
      %22 = vector.broadcast %cst_20 : f32 to vector<16x1xf32>
      %c0_21 = arith.constant 0 : index
      %c0_22 = arith.constant 0 : index
      %23 = vector.load %arg5[%c0_21, %c0_22] : memref<16x1xf32, #tpu.memory_space<vmem>>, vector<16x1xf32>
      tpu.vector_store %arg5[%c0_21, %c0_22], %22 {strides = array<i32>} : memref<16x1xf32, #tpu.memory_space<vmem>>, vector<16x1xf32>,
      %cst_23 = arith.constant 0.000000e+00 : f32
      %24 = vector.broadcast %cst_23 : f32 to vector<16x1xf32>
      %c0_24 = arith.constant 0 : index
      %c0_25 = arith.constant 0 : index
      %25 = vector.load %arg6[%c0_24, %c0_25] : memref<16x1xf32, #tpu.memory_space<vmem>>, vector<16x1xf32>
      tpu.vector_store %arg6[%c0_24, %c0_25], %24 {strides = array<i32>} : memref<16x1xf32, #tpu.memory_space<vmem>>, vector<16x1xf32>,
      %cst_26 = arith.constant -3.000000e+38 : f32
      %26 = vector.broadcast %cst_26 : f32 to vector<128x16xf32>
      %c0_27 = arith.constant 0 : index
      %c0_28 = arith.constant 0 : index
      %27 = vector.load %arg7[%c0_27, %c0_28] : memref<128x16xf32, #tpu.memory_space<vmem>>, vector<128x16xf32>
      tpu.vector_store %arg7[%c0_27, %c0_28], %26 {strides = array<i32>} : memref<128x16xf32, #tpu.memory_space<vmem>>, vector<128x16xf32>,
    } else {
    }
    %c0 = arith.constant 0 : index
    %c0_1 = arith.constant 0 : index
    %3 = vector.load %arg3[%c0, %c0_1] : memref<16x18xf32, #tpu.memory_space<vmem>>, vector<16x18xf32>
    %c0_2 = arith.constant 0 : index
    %c0_3 = arith.constant 0 : index
    %4 = vector.load %arg1[%c0_2, %c0_3] : memref<18x512xf32, #tpu.memory_space<vmem>>, vector<18x512xf32>
    %cst = arith.constant dense<0.000000e+00> : vector<16x512xf32>
    %5 = tpu.matmul %3, %4, %cst {dimension_numbers = #tpu.dot_dimension_numbers<[1], [0], [0], [1], [0, 0, 1, 1], [], []>} : vector<16x18xf32>, vector<18x512xf32>, vector<16x512xf32> -> vector<16x512xf32>
    %c0_4 = arith.constant 0 : index
    %c0_5 = arith.constant 0 : index
    %6 = vector.load %arg2[%c0_4, %c0_5] : memref<1x512xi32, #tpu.memory_space<vmem>>, vector<1x512xi32>
    %c0_6 = arith.constant 0 : index
    %c0_7 = arith.constant 0 : index
    %7 = vector.load %arg5[%c0_6, %c0_7] : memref<16x1xf32, #tpu.memory_space<vmem>>, vector<16x1xf32>
    %cst_8 = arith.constant dense<0.000000e+00> : vector<16xf32>
    %8 = vector.multi_reduction <add>, %5, %cst_8 [1] : vector<16x512xf32> to vector<16xf32>
    %9 = vector.shape_cast %8 : vector<16xf32> to vector<16x1xf32>
    %10 = arith.addf %7, %9 : vector<16x1xf32>
    %c0_9 = arith.constant 0 : index
    %c0_10 = arith.constant 0 : index
    %11 = vector.load %arg5[%c0_9, %c0_10] : memref<16x1xf32, #tpu.memory_space<vmem>>, vector<16x1xf32>
    tpu.vector_store %arg5[%c0_9, %c0_10], %10 {strides = array<i32>} : memref<16x1xf32, #tpu.memory_space<vmem>>, vector<16x1xf32>,
    %c0_11 = arith.constant 0 : index
    %c0_12 = arith.constant 0 : index
    %12 = vector.load %arg6[%c0_11, %c0_12] : memref<16x1xf32, #tpu.memory_space<vmem>>, vector<16x1xf32>
    %13 = arith.mulf %5, %5 : vector<16x512xf32>
    %cst_13 = arith.constant dense<0.000000e+00> : vector<16xf32>
    %14 = vector.multi_reduction <add>, %13, %cst_13 [1] : vector<16x512xf32> to vector<16xf32>
    %15 = vector.shape_cast %14 : vector<16xf32> to vector<16x1xf32>
    %16 = arith.addf %12, %15 : vector<16x1xf32>
    %c0_14 = arith.constant 0 : index
    %c0_15 = arith.constant 0 : index
    %17 = vector.load %arg6[%c0_14, %c0_15] : memref<16x1xf32, #tpu.memory_space<vmem>>, vector<16x1xf32>
    tpu.vector_store %arg6[%c0_14, %c0_15], %16 {strides = array<i32>} : memref<16x1xf32, #tpu.memory_space<vmem>>, vector<16x1xf32>,
    %c0_16 = arith.constant 0 : index
    %c0_17 = arith.constant 0 : index
    %18 = vector.load %arg4[%c0_16, %c0_17] : memref<16x1xf32, #tpu.memory_space<vmem>>, vector<16x1xf32>
    %19 = vector.broadcast %18 : vector<16x1xf32> to vector<16x512xf32>
    %20 = arith.mulf %5, %19 : vector<16x512xf32>
    %c0_i32_18 = arith.constant 0 : i32
    %c16_i32 = arith.constant 16 : i32
    %21 = arith.addi %c0_i32_18, %c16_i32 : i32
    %c1_i32 = arith.constant 1 : i32
    scf.for %arg8 = %c0_i32_18 to %21 step %c1_i32  : i32 {
      %c1_i32_20 = arith.constant 1 : i32
      %22 = arith.muli %arg8, %c1_i32_20 : i32
      %c0_i32_21 = arith.constant 0 : i32
      %23 = arith.addi %c0_i32_21, %22 : i32
      %c8_i32 = arith.constant 8 : i32
      %24 = arith.muli %23, %c8_i32 : i32
      %25 = tpu.assume_multiple %24, 8 : i32
      %26 = tpu.iota {dimensions = array<i32: 0>} : vector<8x512xi32>
      %27 = vector.broadcast %25 : i32 to vector<8x512xi32>
      %28 = arith.addi %26, %27 : vector<8x512xi32>
      %29 = vector.broadcast %6 : vector<1x512xi32> to vector<8x512xi32>
      %30 = arith.cmpi eq, %28, %29 : vector<8x512xi32>
      %31 = vector.shape_cast %30 : vector<8x512xi1> to vector<8x1x512xi1>
      %32 = vector.shape_cast %20 : vector<16x512xf32> to vector<1x16x512xf32>
      %cst_22 = arith.constant -3.000000e+38 : f32
      %33 = vector.shape_cast %31 : vector<8x1x512xi1> to vector<8x1x512xi1>
      %34 = vector.broadcast %33 : vector<8x1x512xi1> to vector<8x16x512xi1>
      %35 = vector.shape_cast %32 : vector<1x16x512xf32> to vector<1x16x512xf32>
      %36 = vector.broadcast %35 : vector<1x16x512xf32> to vector<8x16x512xf32>
      %37 = vector.broadcast %cst_22 : f32 to vector<8x16x512xf32>
      %38 = arith.select %34, %36, %37 : vector<8x16x512xi1>, vector<8x16x512xf32>
      %cst_23 = arith.constant dense<0xFF800000> : vector<8x16xf32>
      %39 = vector.multi_reduction <maximumf>, %38, %cst_23 [2] : vector<8x16x512xf32> to vector<8x16xf32>
      %40 = arith.index_cast %25 : i32 to index
      %c0_24 = arith.constant 0 : index
      %41 = vector.load %arg7[%40, %c0_24] : memref<128x16xf32, #tpu.memory_space<vmem>>, vector<8x16xf32>
      %42 = arith.maximumf %41, %39 : vector<8x16xf32>
      %43 = arith.index_cast %25 : i32 to index
      %c0_25 = arith.constant 0 : index
      %44 = vector.load %arg7[%43, %c0_25] : memref<128x16xf32, #tpu.memory_space<vmem>>, vector<8x16xf32>
      tpu.vector_store %arg7[%43, %c0_25], %42 {strides = array<i32>} : memref<128x16xf32, #tpu.memory_space<vmem>>, vector<8x16xf32>,
    }
    %c16_i32_19 = arith.constant 16 : i32
    return
  }
  func.func @transform_0(%arg0: i32) -> (i32, i32) {
    %c0_i32 = arith.constant 0 : i32
    %c0_i32_0 = arith.constant 0 : i32
    return %c0_i32, %arg0 : i32, i32
  }
  func.func @transform_1(%arg0: i32) -> (i32, i32) {
    %c0_i32 = arith.constant 0 : i32
    %c0_i32_0 = arith.constant 0 : i32
    return %c0_i32, %arg0 : i32, i32
  }
  func.func @transform_2(%arg0: i32) -> (i32, i32) {
    %c0_i32 = arith.constant 0 : i32
    %c0_i32_0 = arith.constant 0 : i32
    %c0_i32_1 = arith.constant 0 : i32
    return %c0_i32, %c0_i32_0 : i32, i32
  }
  func.func @transform_3(%arg0: i32) -> (i32, i32) {
    %c0_i32 = arith.constant 0 : i32
    %c0_i32_0 = arith.constant 0 : i32
    %c0_i32_1 = arith.constant 0 : i32
    return %c0_i32, %c0_i32_0 : i32, i32
  }
  func.func @transform_4(%arg0: i32) -> (i32, i32) {
    %c0_i32 = arith.constant 0 : i32
    %c0_i32_0 = arith.constant 0 : i32
    %c0_i32_1 = arith.constant 0 : i32
    return %c0_i32, %c0_i32_0 : i32, i32
  }
  func.func @transform_5(%arg0: i32) -> (i32, i32) {
    %c0_i32 = arith.constant 0 : i32
    %c0_i32_0 = arith.constant 0 : i32
    %c0_i32_1 = arith.constant 0 : i32
    return %c0_i32, %c0_i32_0 : i32, i32
  }
  func.func @transform_6(%arg0: i32) -> (i32, i32) {
    %c0_i32 = arith.constant 0 : i32
    %c0_i32_0 = arith.constant 0 : i32
    %c0_i32_1 = arith.constant 0 : i32
    return %c0_i32, %c0_i32_0 : i32, i32
  }
}

</mosaic_0001>

<llo_original>
// kernel: tpu_custom_call.1
$region0: #{tpu_custom_call.1}
  #allocation0 [shape = 'u32[]', space=smem, size = 0x4, offset = 0x4, fixed_abs, tag = 'smem constant byte address 0x4 - core index']
  #allocation1 [shape = 'u32[144,128]{1,0:T(1,128)}', space=vmem, size = 0x12000, scoped, tag = 'internal scratch']
  %s0 = inlined_call_operand.hbm [shape: f32[18,2048], index: 0, kind: input, shape index: {}]
  %s1 = inlined_call_operand.vmem [shape: s32[1,2048], index: 1, kind: input, shape index: {}]
  %s2 = inlined_call_operand.hbm [shape: f32[16,18], index: 2, kind: input, shape index: {}]
  %s3 = inlined_call_operand.vmem [shape: f32[16,1], index: 3, kind: input, shape index: {}]
  %s4 = inlined_call_operand.vmem [shape: f32[16,1], index: 4, kind: output, shape index: {0}]
  %s5 = inlined_call_operand.vmem [shape: f32[16,1], index: 5, kind: output, shape index: {1}]
  %s6 = inlined_call_operand.vmem [shape: f32[128,16], index: 6, kind: output, shape index: {2}]
  %7 = xla_tuple %s4, %s5, %s6
  %s8 = sld [smem:[#allocation0]]
  $region84: #{tpu_custom_call.1} parent=0
    _
  %s10 = ssub.s32 1, %s8
  %s11 = scalar_select 0, %s10, %s8
  $region1: #{tpu_custom_call.1} parent=0
    #allocation2 [shape = 'u8[98304]{0}', space=vmem, size = 0x18000, scoped, tag = 'input window, operand 0']
    #allocation3 [shape = 's32[2]{0}', space=sflag, size = 0x8, scoped, tag = 'scoped memory for tpu_custom_call.1']
    #allocation4 [shape = 'u8[8192]{0}', space=vmem, size = 0x2000, scoped, tag = 'input window, operand 2, single buffered']
    #allocation5 [shape = 's32[1]{0}', space=sflag, size = 0x4, scoped, tag = 'scoped memory for tpu_custom_call.1']
    %12 = vsyncpa [#allocation3], 0
    %s13 = scalar_lea.sflag [#allocation3], 1
    %14 = vsyncpa %s13, 0
    %15 = vsyncpa [#allocation5], 0
    loop: start=0, step=1, limit=6
    $region2: #{tpu_custom_call.1} parent=1 // loop_pre_header
      _
    $region3: #{tpu_custom_call.1} parent=1 // loop_header
      %s17 = sphi 0, %s21
      %p18 = scmp.ge.s32.totalorder %s17, 6
      %s27 = sphi 0, %s29
      %s30 = sphi 0, %s27
      %s31 = sphi 0, %s30
      %s47 = sphi 0, %s31
      %s53 = sphi 0, %s55
      %s56 = sphi 0, %s53
      %s57 = sphi 0, %s56
      %s73 = sphi 0, %s57
      %s77 = sphi 0, %s77
      %s79 = sphi 0, %s77
      %s80 = sphi 0, %s79
      %s94 = sphi 0, %s80
      %s98 = sphi 0, %s98
      %s100 = sphi 0, %s98
      %s101 = sphi 0, %s100
      %s115 = sphi 0, %s101
      %s119 = sphi 0, %s119
      %s121 = sphi 0, %s119
      %s122 = sphi 0, %s121
      %s136 = sphi 0, %s122
      %s140 = sphi 0, %s140
      %s142 = sphi 0, %s140
      %s143 = sphi 0, %s142
      %s157 = sphi 0, %s143
      %s161 = sphi 0, %s161
      %s163 = sphi 0, %s161
      %s164 = sphi 0, %s163
      %s178 = sphi 0, %s164
    $region4: #{tpu_custom_call.1} parent=1 // loop_header_branch
      %20 = sbr.rel (%p18) target = $region8
    $region5: #{tpu_custom_call.1} parent=1 // loop_body
      %s22 = ssub.s32 %s17, 1
      %s23 = ssub.s32 %s17, 2
      %s24 = sadd.s32 %s17, 1
      %s25 = ssub.s32 %s17, %s24
      %p26 = scmp.eq.s32.totalorder %s25, 0
      %s28 = sadd.s32 %s27, 1
      %s29 = scalar_select %p26, %s27, %s28
      %p32 = pneg %p26
      %p33 = scmp.eq.s32.totalorder %s17, 3
      %p34 = por %p32, %p33
      %p35 = scmp.ne.s32.totalorder %s27, %s30
      %p36 = scmp.eq.s32.totalorder %s17, 0
      %p37 = por %p35, %p36
      %p38 = scmp.ne.s32.totalorder %s27, %s30
      %p39 = scmp.eq.s32.totalorder %s22, 3
      %p40 = por %p38, %p39
      %p41 = scmp.ne.s32.totalorder %s30, %s31
      %p42 = scmp.eq.s32.totalorder %s22, 0
      %p43 = por %p41, %p42
      %p44 = scmp.ne.s32.totalorder %s30, %s31
      %p45 = scmp.eq.s32.totalorder %s23, 3
      %p46 = por %p44, %p45
      %p48 = scmp.ne.s32.totalorder %s31, %s47
      %p49 = scmp.eq.s32.totalorder %s23, 0
      %p50 = por %p48, %p49
      %s51 = ssub.s32 %s17, %s24
      %p52 = scmp.eq.s32.totalorder %s51, 0
      %s54 = sadd.s32 %s53, 1
      %s55 = scalar_select %p52, %s53, %s54
      %p58 = pneg %p52
      %p59 = scmp.eq.s32.totalorder %s17, 3
      %p60 = por %p58, %p59
      %p61 = scmp.ne.s32.totalorder %s53, %s56
      %p62 = scmp.eq.s32.totalorder %s17, 0
      %p63 = por %p61, %p62
      %p64 = scmp.ne.s32.totalorder %s53, %s56
      %p65 = scmp.eq.s32.totalorder %s22, 3
      %p66 = por %p64, %p65
      %p67 = scmp.ne.s32.totalorder %s56, %s57
      %p68 = scmp.eq.s32.totalorder %s22, 0
      %p69 = por %p67, %p68
      %p70 = scmp.ne.s32.totalorder %s56, %s57
      %p71 = scmp.eq.s32.totalorder %s23, 3
      %p72 = por %p70, %p71
      %p74 = scmp.ne.s32.totalorder %s57, %s73
      %p75 = scmp.eq.s32.totalorder %s23, 0
      %p76 = por %p74, %p75
      %s78 = sadd.s32 %s77, 1
      %p81 = scmp.eq.s32.totalorder %s17, 3
      %p82 = scmp.ne.s32.totalorder %s77, %s79
      %p83 = scmp.eq.s32.totalorder %s17, 0
      %p84 = por %p82, %p83
      %p85 = scmp.ne.s32.totalorder %s77, %s79
      %p86 = scmp.eq.s32.totalorder %s22, 3
      %p87 = por %p85, %p86
      %p88 = scmp.ne.s32.totalorder %s79, %s80
      %p89 = scmp.eq.s32.totalorder %s22, 0
      %p90 = por %p88, %p89
      %p91 = scmp.ne.s32.totalorder %s79, %s80
      %p92 = scmp.eq.s32.totalorder %s23, 3
      %p93 = por %p91, %p92
      %p95 = scmp.ne.s32.totalorder %s80, %s94
      %p96 = scmp.eq.s32.totalorder %s23, 0
      %p97 = por %p95, %p96
      %s99 = sadd.s32 %s98, 1
      %p102 = scmp.eq.s32.totalorder %s17, 3
      %p103 = scmp.ne.s32.totalorder %s98, %s100
      %p104 = scmp.eq.s32.totalorder %s17, 0
      %p105 = por %p103, %p104
      %p106 = scmp.ne.s32.totalorder %s98, %s100
      %p107 = scmp.eq.s32.totalorder %s22, 3
      %p108 = por %p106, %p107
      %p109 = scmp.ne.s32.totalorder %s100, %s101
      %p110 = scmp.eq.s32.totalorder %s22, 0
      %p111 = por %p109, %p110
      %p112 = scmp.ne.s32.totalorder %s100, %s101
      %p113 = scmp.eq.s32.totalorder %s23, 3
      %p114 = por %p112, %p113
      %p116 = scmp.ne.s32.totalorder %s101, %s115
      %p117 = scmp.eq.s32.totalorder %s23, 0
      %p118 = por %p116, %p117
      %s120 = sadd.s32 %s119, 1
      %p123 = scmp.eq.s32.totalorder %s17, 3
      %p124 = scmp.ne.s32.totalorder %s119, %s121
      %p125 = scmp.eq.s32.totalorder %s17, 0
      %p126 = por %p124, %p125
      %p127 = scmp.ne.s32.totalorder %s119, %s121
      %p128 = scmp.eq.s32.totalorder %s22, 3
      %p129 = por %p127, %p128
      %p130 = scmp.ne.s32.totalorder %s121, %s122
      %p131 = scmp.eq.s32.totalorder %s22, 0
      %p132 = por %p130, %p131
      %p133 = scmp.ne.s32.totalorder %s121, %s122
      %p134 = scmp.eq.s32.totalorder %s23, 3
      %p135 = por %p133, %p134
      %p137 = scmp.ne.s32.totalorder %s122, %s136
      %p138 = scmp.eq.s32.totalorder %s23, 0
      %p139 = por %p137, %p138
      %s141 = sadd.s32 %s140, 1
      %p144 = scmp.eq.s32.totalorder %s17, 3
      %p145 = scmp.ne.s32.totalorder %s140, %s142
      %p146 = scmp.eq.s32.totalorder %s17, 0
      %p147 = por %p145, %p146
      %p148 = scmp.ne.s32.totalorder %s140, %s142
      %p149 = scmp.eq.s32.totalorder %s22, 3
      %p150 = por %p148, %p149
      %p151 = scmp.ne.s32.totalorder %s142, %s143
      %p152 = scmp.eq.s32.totalorder %s22, 0
      %p153 = por %p151, %p152
      %p154 = scmp.ne.s32.totalorder %s142, %s143
      %p155 = scmp.eq.s32.totalorder %s23, 3
      %p156 = por %p154, %p155
      %p158 = scmp.ne.s32.totalorder %s143, %s157
      %p159 = scmp.eq.s32.totalorder %s23, 0
      %p160 = por %p158, %p159
      %s162 = sadd.s32 %s161, 1
      %p165 = scmp.eq.s32.totalorder %s17, 3
      %p166 = scmp.ne.s32.totalorder %s161, %s163
      %p167 = scmp.eq.s32.totalorder %s17, 0
      %p168 = por %p166, %p167
      %p169 = scmp.ne.s32.totalorder %s161, %s163
      %p170 = scmp.eq.s32.totalorder %s22, 3
      %p171 = por %p169, %p170
      %p172 = scmp.ne.s32.totalorder %s163, %s164
      %p173 = scmp.eq.s32.totalorder %s22, 0
      %p174 = por %p172, %p173
      %p175 = scmp.ne.s32.totalorder %s163, %s164
      %p176 = scmp.eq.s32.totalorder %s23, 3
      %p177 = por %p175, %p176
      %p179 = scmp.ne.s32.totalorder %s164, %s178
      %p180 = scmp.eq.s32.totalorder %s23, 0
      %p181 = por %p179, %p180
      %p182 = scmp.le.s32.totalorder 1, %s17
      %p183 = scmp.lt.s32.totalorder %s17, 5
      %p184 = pnand %p182, %p183
      %p185 = pneg %p184
      // Predicated region
      $region9: #{tpu_custom_call.1} parent=5 // pred_check
        _
      $region10: #{tpu_custom_call.1} parent=5 // pred_check_branch
        %187 = sbr.rel (%p184) target = $region12
      $region11: #{tpu_custom_call.1} parent=5 // pred_region
        %s188 = ssub.s32 %s17, 1
        // Predicated region
        $region13: #{tpu_custom_call.1} parent=11 // pred_check
          %p189 = pneg %p90
        $region14: #{tpu_custom_call.1} parent=11 // pred_check_branch
          %191 = sbr.rel (%p189) target = $region16
        $region15: #{tpu_custom_call.1} parent=11 // pred_region
          %s193 = ssub.s32 256, 256
          %194 = vsyncadd [#allocation5], %s193
          %s195 = sshll.u32 [#allocation4], 4
          %s196 = int_to_ptr.vmem [resolvable:$true] %s195
          %201 = dma.hbm_to_vmem [thread:$0]  %s2, 256, %s196, [#allocation5], 128, 128, 8
        $region16: #{tpu_custom_call.1} parent=11 // pred_fallthru
          _
        // Predicated region
        $region17: #{tpu_custom_call.1} parent=11 // pred_check
          %p202 = pneg %p111
        $region18: #{tpu_custom_call.1} parent=11 // pred_check_branch
          %204 = sbr.rel (%p202) target = $region20
        $region19: #{tpu_custom_call.1} parent=11 // pred_region
          _
        $region20: #{tpu_custom_call.1} parent=11 // pred_fallthru
          _
      $region12: #{tpu_custom_call.1} parent=5 // pred_fallthru
        _
      %p205 = scmp.lt.s32.totalorder %s17, 4
      // Predicated region
      $region21: #{tpu_custom_call.1} parent=5 // pred_check
        %p206 = pneg %p205
      $region22: #{tpu_custom_call.1} parent=5 // pred_check_branch
        %208 = sbr.rel (%p206) target = $region24
      $region23: #{tpu_custom_call.1} parent=5 // pred_region
        // Predicated region
        $region25: #{tpu_custom_call.1} parent=23 // pred_check
          %p209 = pneg %p37
        $region26: #{tpu_custom_call.1} parent=23 // pred_check_branch
          %211 = sbr.rel (%p209) target = $region28
        $region27: #{tpu_custom_call.1} parent=23 // pred_region
          %s212 = sand.u32 %s27, 1
          %s213 = scalar_lea.sflag [#allocation3], %s212
          %s214 = sand.u32 %s27, 1
          %s215 = smul.addr %s214, 96
          %s216 = scalar_lea.vmem [#allocation2], %s215
          %s217 = smul.u32 4, %s17
          %s219 = ssub.s32 1536, 1536
          %220 = vsyncadd %s213, %s219
          %s221 = smul.addr %s217, 128
          %s222 = scalar_lea.hbm %s0, %s221
          %s223 = sshll.u32 %s216, 4
          %s224 = int_to_ptr.vmem [resolvable:$true] %s223
          %229 = dma.hbm_to_vmem [thread:$0]  %s222, 1536, %s224, %s213, 2048, 512, 32
        $region28: #{tpu_custom_call.1} parent=23 // pred_fallthru
          _
        // Predicated region
        $region29: #{tpu_custom_call.1} parent=23 // pred_check
          %p230 = pneg %p63
        $region30: #{tpu_custom_call.1} parent=23 // pred_check_branch
          %232 = sbr.rel (%p230) target = $region32
        $region31: #{tpu_custom_call.1} parent=23 // pred_region
          %s233 = smul.u32 4, %s17
          %p234 = scmp.lt.s32.totalorder %s233, 15
          %s235 = scalar_select %p234, %s233, 15
          %s236 = scalar_lea.vmem %s1, %s235
          %s237 = smul.u32 4, %s17
        $region32: #{tpu_custom_call.1} parent=23 // pred_fallthru
          _
      $region24: #{tpu_custom_call.1} parent=5 // pred_fallthru
        _
      %p238 = scmp.le.s32.totalorder 1, %s17
      %p239 = scmp.lt.s32.totalorder %s17, 5
      %p240 = pnand %p238, %p239
      %p241 = pneg %p240
      // Predicated region
      $region33: #{tpu_custom_call.1} parent=5 // pred_check
        _
      $region34: #{tpu_custom_call.1} parent=5 // pred_check_branch
        %243 = sbr.rel (%p240) target = $region36
      $region35: #{tpu_custom_call.1} parent=5 // pred_region
        %s244 = ssub.s32 %s17, 1
        %s245 = sand.u32 %s30, 1
        %s246 = scalar_lea.sflag [#allocation3], %s245
        %s247 = sand.u32 %s30, 1
        %s248 = smul.addr %s247, 96
        %s249 = scalar_lea.vmem [#allocation2], %s248
        // Predicated region
        $region37: #{tpu_custom_call.1} parent=35 // pred_check
          %p250 = pneg %p43
        $region38: #{tpu_custom_call.1} parent=35 // pred_check_branch
          %252 = sbr.rel (%p250) target = $region40
        $region39: #{tpu_custom_call.1} parent=35 // pred_region
          %253 = dma.done %s246, 1536
        $region40: #{tpu_custom_call.1} parent=35 // pred_fallthru
          _
        // Predicated region
        $region41: #{tpu_custom_call.1} parent=35 // pred_check
          %p254 = pneg %p90
        $region42: #{tpu_custom_call.1} parent=35 // pred_check_branch
          %256 = sbr.rel (%p254) target = $region44
        $region43: #{tpu_custom_call.1} parent=35 // pred_region
          %257 = dma.done [#allocation5], 256
        $region44: #{tpu_custom_call.1} parent=35 // pred_fallthru
          _
        %s258 = sand.u32 %s30, 1
        %s259 = scalar_lea.sflag [#allocation3], %s258
        %s260 = sand.u32 %s30, 1
        %s261 = smul.addr %s260, 96
        %s262 = scalar_lea.vmem [#allocation2], %s261
        %p263 = pneg %p43
        %p264 = pneg %p40
        %s265 = smul.u32 4, %s22
        %p266 = scmp.lt.s32.totalorder %s265, 15
        %s267 = scalar_select %p266, %s265, 15
        %s268 = scalar_lea.vmem %s1, %s267
        %p269 = pneg %p69
        %p270 = pneg %p66
        %p271 = pneg %p90
        %p272 = pneg %p87
        %p273 = pneg %p111
        %p274 = pneg %p108
        %p275 = pneg %p132
        %p276 = pneg %p129
        %p277 = pneg %p153
        %p278 = pneg %p150
        %p279 = pneg %p174
        %p280 = pneg %p171
        %s281 = smul.u32 4, %s22
        %s282 = smul.u32 4, %s22
        %p283 = scmp.lt.s32.totalorder %s282, 15
        %s284 = scalar_select %p283, %s282, 15
        %s285 = scalar_lea.vmem %s1, %s284
        %s286 = smul.u32 4, %s22
        %p287 = scmp.eq.s32.totalorder %s22, 0
        // Predicated region
        $region45: #{tpu_custom_call.1} parent=35 // pred_check
          %p288 = pneg %p287
        $region46: #{tpu_custom_call.1} parent=35 // pred_check_branch
          %290 = sbr.rel (%p288) target = $region48
        $region47: #{tpu_custom_call.1} parent=35 // pred_region
          %vm291 = vcmask 7168
          %292 = vst.msk [vmem:[%s4] sm:$0xff] %vm291, 0.0
          %293 = vst.msk [vmem:[%s4 + $0x8] sm:$0xff] %vm291, 0.0
          %294 = vst.msk [vmem:[%s5] sm:$0xff] %vm291, 0.0
          %295 = vst.msk [vmem:[%s5 + $0x8] sm:$0xff] %vm291, 0.0
          %vm296 = vcmask 130048
          %297 = vst.msk [vmem:[%s6] sm:$0xff] %vm296, -3e+38
          %298 = vst.msk [vmem:[%s6 + $0x8] sm:$0xff] %vm296, -3e+38
          %299 = vst.msk [vmem:[%s6 + $0x10] sm:$0xff] %vm296, -3e+38
          %300 = vst.msk [vmem:[%s6 + $0x18] sm:$0xff] %vm296, -3e+38
          %301 = vst.msk [vmem:[%s6 + $0x20] sm:$0xff] %vm296, -3e+38
          %302 = vst.msk [vmem:[%s6 + $0x28] sm:$0xff] %vm296, -3e+38
          %303 = vst.msk [vmem:[%s6 + $0x30] sm:$0xff] %vm296, -3e+38
          %304 = vst.msk [vmem:[%s6 + $0x38] sm:$0xff] %vm296, -3e+38
          %305 = vst.msk [vmem:[%s6 + $0x40] sm:$0xff] %vm296, -3e+38
          %306 = vst.msk [vmem:[%s6 + $0x48] sm:$0xff] %vm296, -3e+38
          %307 = vst.msk [vmem:[%s6 + $0x50] sm:$0xff] %vm296, -3e+38
          %308 = vst.msk [vmem:[%s6 + $0x58] sm:$0xff] %vm296, -3e+38
          %309 = vst.msk [vmem:[%s6 + $0x60] sm:$0xff] %vm296, -3e+38
          %310 = vst.msk [vmem:[%s6 + $0x68] sm:$0xff] %vm296, -3e+38
          %311 = vst.msk [vmem:[%s6 + $0x70] sm:$0xff] %vm296, -3e+38
          %312 = vst.msk [vmem:[%s6 + $0x78] sm:$0xff] %vm296, -3e+38
        $region48: #{tpu_custom_call.1} parent=35 // pred_fallthru
          _
        %v313 = vld [vmem:[#allocation4] sm:$0xff]
        %v314 = vld [vmem:[#allocation4 + $0x8] sm:$0xff]
        %v315 = vld [vmem:[%s249] sm:$0xff]
        %v316 = vld [vmem:[%s249 + $0x8] sm:$0xff]
        %v317 = vld [vmem:[%s249 + $0x10] sm:$0xff]
        %v318 = vld [vmem:[%s249 + $0x18] sm:$0xff]
        %v319 = vld [vmem:[%s249 + $0x20] sm:$0xff]
        %v320 = vld [vmem:[%s249 + $0x28] sm:$0xff]
        %v321 = vld [vmem:[%s249 + $0x30] sm:$0xff]
        %v322 = vld [vmem:[%s249 + $0x38] sm:$0xff]
        %v323 = vld [vmem:[%s249 + $0x40] sm:$0x3]
        %v324 = vld [vmem:[%s249 + $0x48] sm:$0x3]
        %v325 = vld [vmem:[%s249 + $0x50] sm:$0x3]
        %v326 = vld [vmem:[%s249 + $0x58] sm:$0x3]
        %vm327 = vcmask 146432
        %v329 = vsel %vm327, %v313, 0
        %v332 = vsel %vm327, %v314, 0
        %vm334 = vcmask 1041408
        %v336 = vsel %vm334, %v323, 0
        %v339 = vsel %vm334, %v324, 0
        %v342 = vsel %vm334, %v325, 0
        %v345 = vsel %vm334, %v326, 0
        %347 = vmatprep.subr.mxu0 %v316
        %348 = vmatpush1.msra.mxu0 %v315
        %349 = vmatprep.subr.mxu0 %v320
        %350 = vmatpush1.msra.mxu0 %v319
        %351 = vmatprep.subr.mxu0 %v339
        %352 = vmatpush1.msra.mxu0 %v336
        %353 = vmatprep.subr.mxu0 0.0
        %354 = vmatpush1.msra.mxu0 0.0
        %355 = vmatprep.subr.mxu0 0.0
        %356 = vmatpush1.msra.mxu0 0.0
        %357 = vmatprep.subr.mxu0 0.0
        %358 = vmatpush1.msra.mxu0 0.0
        %359 = vmatprep.subr.mxu0 0.0
        %360 = vmatpush1.msra.mxu0 0.0
        %361 = vmatprep.subr.mxu0 0.0
        %362 = vmatpush1.msra.mxu0 0.0
        %363 = vmatprep.subr.mxu0 0.0
        %364 = vmatpush1.msra.mxu0 0.0
        %365 = vmatprep.subr.mxu0 0.0
        %366 = vmatpush1.msra.mxu0 0.0
        %367 = vmatprep.subr.mxu0 0.0
        %368 = vmatpush1.msra.mxu0 0.0
        %369 = vmatprep.subr.mxu0 0.0
        %370 = vmatpush1.msra.mxu0 0.0
        %371 = vmatprep.subr.mxu0 0.0
        %372 = vmatpush1.msra.mxu0 0.0
        %373 = vmatprep.subr.mxu0 0.0
        %374 = vmatpush1.msra.mxu0 0.0
        %375 = vmatprep.subr.mxu0 0.0
        %376 = vmatpush1.msra.mxu0 0.0
        %377 = vmatprep.subr.mxu0 0.0
        %378 = vmatpush1.msra.mxu0 0.0
        %379 = vmatprep.subr.mxu0 0.0
        %380 = vmatpush1.msra.mxu0 0.0
        %381 = vmatprep.subr.mxu0 0.0
        %382 = vmatpush1.msra.mxu0 0.0
        %383 = vmatprep.subr.mxu0 0.0
        %384 = vmatpush1.msra.mxu0 0.0
        %385 = vmatprep.subr.mxu0 0.0
        %386 = vmatpush1.msra.mxu0 0.0
        %387 = vmatprep.subr.mxu0 0.0
        %388 = vmatpush1.msra.mxu0 0.0
        %389 = vmatprep.subr.mxu0 0.0
        %390 = vmatpush1.msra.mxu0 0.0
        %391 = vmatprep.subr.mxu0 0.0
        %392 = vmatpush1.msra.mxu0 0.0
        %393 = vmatprep.subr.mxu0 0.0
        %394 = vmatpush1.msra.mxu0 0.0
        %395 = vmatprep.subr.mxu0 0.0
        %396 = vmatpush1.msra.mxu0 0.0
        %397 = vmatprep.subr.mxu0 0.0
        %398 = vmatpush1.msra.mxu0 0.0
        %399 = vmatprep.subr.mxu0 0.0
        %400 = vmatpush1.msra.mxu0 0.0
        %401 = vmatprep.subr.mxu0 0.0
        %402 = vmatpush1.msra.mxu0 0.0
        %403 = vmatprep.subr.mxu0 0.0
        %404 = vmatpush1.msra.mxu0 0.0
        %405 = vmatprep.subr.mxu0 0.0
        %406 = vmatpush1.msra.mxu0 0.0
        %407 = vmatprep.subr.mxu0 0.0
        %408 = vmatpush1.msra.mxu0 0.0
        %409 = vmatprep.subr.mxu0 0.0
        %410 = vmatpush1.msra.mxu0 0.0
        %411 = vmatprep.mubr.f32.mxu0 0.0
        %412 = vmatmul.mubr.f32.gmra.mrb[0].mxu0 %v329
        %v413 = vpop.f32.mrb[0].mxu0
        %v414 = vadd.f32 0.0, %v413
        %v415 = vpop.f32.mrb[0].mxu0
        %v416 = vadd.f32 0.0, %v415
        %417 = vmatprep.mubr.f32.mxu0 0.0
        %418 = vmatmul.mubr.f32.gmra.mrb[0].mxu0 %v332
        %v419 = vpop.f32.mrb[0].mxu0
        %v420 = vadd.f32 0.0, %v419
        %v421 = vpop.f32.mrb[0].mxu0
        %v422 = vadd.f32 0.0, %v421
        %423 = vdwg.mxu0
        %424 = vmatprep.subr.mxu0 %v318
        %425 = vmatpush1.msra.mxu0 %v317
        %426 = vmatprep.subr.mxu0 %v322
        %427 = vmatpush1.msra.mxu0 %v321
        %428 = vmatprep.subr.mxu0 %v345
        %429 = vmatpush1.msra.mxu0 %v342
        %430 = vmatprep.subr.mxu0 0.0
        %431 = vmatpush1.msra.mxu0 0.0
        %432 = vmatprep.subr.mxu0 0.0
        %433 = vmatpush1.msra.mxu0 0.0
        %434 = vmatprep.subr.mxu0 0.0
        %435 = vmatpush1.msra.mxu0 0.0
        %436 = vmatprep.subr.mxu0 0.0
        %437 = vmatpush1.msra.mxu0 0.0
        %438 = vmatprep.subr.mxu0 0.0
        %439 = vmatpush1.msra.mxu0 0.0
        %440 = vmatprep.subr.mxu0 0.0
        %441 = vmatpush1.msra.mxu0 0.0
        %442 = vmatprep.subr.mxu0 0.0
        %443 = vmatpush1.msra.mxu0 0.0
        %444 = vmatprep.subr.mxu0 0.0
        %445 = vmatpush1.msra.mxu0 0.0
        %446 = vmatprep.subr.mxu0 0.0
        %447 = vmatpush1.msra.mxu0 0.0
        %448 = vmatprep.subr.mxu0 0.0
        %449 = vmatpush1.msra.mxu0 0.0
        %450 = vmatprep.subr.mxu0 0.0
        %451 = vmatpush1.msra.mxu0 0.0
        %452 = vmatprep.subr.mxu0 0.0
        %453 = vmatpush1.msra.mxu0 0.0
        %454 = vmatprep.subr.mxu0 0.0
        %455 = vmatpush1.msra.mxu0 0.0
        %456 = vmatprep.subr.mxu0 0.0
        %457 = vmatpush1.msra.mxu0 0.0
        %458 = vmatprep.subr.mxu0 0.0
        %459 = vmatpush1.msra.mxu0 0.0
        %460 = vmatprep.subr.mxu0 0.0
        %461 = vmatpush1.msra.mxu0 0.0
        %462 = vmatprep.subr.mxu0 0.0
        %463 = vmatpush1.msra.mxu0 0.0
        %464 = vmatprep.subr.mxu0 0.0
        %465 = vmatpush1.msra.mxu0 0.0
        %466 = vmatprep.subr.mxu0 0.0
        %467 = vmatpush1.msra.mxu0 0.0
        %468 = vmatprep.subr.mxu0 0.0
        %469 = vmatpush1.msra.mxu0 0.0
        %470 = vmatprep.subr.mxu0 0.0
        %471 = vmatpush1.msra.mxu0 0.0
        %472 = vmatprep.subr.mxu0 0.0
        %473 = vmatpush1.msra.mxu0 0.0
        %474 = vmatprep.subr.mxu0 0.0
        %475 = vmatpush1.msra.mxu0 0.0
        %476 = vmatprep.subr.mxu0 0.0
        %477 = vmatpush1.msra.mxu0 0.0
        %478 = vmatprep.subr.mxu0 0.0
        %479 = vmatpush1.msra.mxu0 0.0
        %480 = vmatprep.subr.mxu0 0.0
        %481 = vmatpush1.msra.mxu0 0.0
        %482 = vmatprep.subr.mxu0 0.0
        %483 = vmatpush1.msra.mxu0 0.0
        %484 = vmatprep.subr.mxu0 0.0
        %485 = vmatpush1.msra.mxu0 0.0
        %486 = vmatprep.subr.mxu0 0.0
        %487 = vmatpush1.msra.mxu0 0.0
        %488 = vmatprep.mubr.f32.mxu0 0.0
        %489 = vmatmul.mubr.f32.gmra.mrb[0].mxu0 %v329
        %v490 = vpop.f32.mrb[0].mxu0
        %v491 = vadd.f32 0.0, %v490
        %v492 = vpop.f32.mrb[0].mxu0
        %v493 = vadd.f32 0.0, %v492
        %494 = vmatprep.mubr.f32.mxu0 0.0
        %495 = vmatmul.mubr.f32.gmra.mrb[0].mxu0 %v332
        %v496 = vpop.f32.mrb[0].mxu0
        %v497 = vadd.f32 0.0, %v496
        %v498 = vpop.f32.mrb[0].mxu0
        %v499 = vadd.f32 0.0, %v498
        %500 = vdwg.mxu0
        %v501 = vld [vmem:[%s285] sm:$0xf]
        %v502 = vld [vmem:[%s4] sm:$0xff]
        %v503 = vld [vmem:[%s4 + $0x8] sm:$0xff]
        %v504 = vadd.f32 %v414, %v416
        %v505 = vadd.f32 %v504, %v491
        %v506 = vadd.f32 %v505, %v493
        %507 = vadd.xlane.f32.xlu0 %v506
        %v508 = vpop.xlane.xlu0 %507
        %v509 = vadd.f32 %v420, %v422
        %v510 = vadd.f32 %v509, %v497
        %v511 = vadd.f32 %v510, %v499
        %512 = vadd.xlane.f32.xlu0 %v511
        %v513 = vpop.xlane.xlu0 %512
        %v514 = vadd.f32 %v502, %v508
        %v515 = vadd.f32 %v503, %v513
        %vm516 = vcmask 7168
        %517 = vst.msk [vmem:[%s4] sm:$0xff] %vm516, %v514
        %518 = vst.msk [vmem:[%s4 + $0x8] sm:$0xff] %vm516, %v515
        %v519 = vld [vmem:[%s5] sm:$0xff]
        %v520 = vld [vmem:[%s5 + $0x8] sm:$0xff]
        %v521 = vmul.f32 %v414, %v414
        %v522 = vmul.f32 %v416, %v416
        %v523 = vmul.f32 %v491, %v491
        %v524 = vmul.f32 %v493, %v493
        %v525 = vmul.f32 %v420, %v420
        %v526 = vmul.f32 %v422, %v422
        %v527 = vmul.f32 %v497, %v497
        %v528 = vmul.f32 %v499, %v499
        %v529 = vadd.f32 %v521, %v522
        %v530 = vadd.f32 %v529, %v523
        %v531 = vadd.f32 %v530, %v524
        %532 = vadd.xlane.f32.xlu0 %v531
        %v533 = vpop.xlane.xlu0 %532
        %v534 = vadd.f32 %v525, %v526
        %v535 = vadd.f32 %v534, %v527
        %v536 = vadd.f32 %v535, %v528
        %537 = vadd.xlane.f32.xlu0 %v536
        %v538 = vpop.xlane.xlu0 %537
        %v539 = vadd.f32 %v519, %v533
        %v540 = vadd.f32 %v520, %v538
        %541 = vst.msk [vmem:[%s5] sm:$0xff] %vm516, %v539
        %542 = vst.msk [vmem:[%s5 + $0x8] sm:$0xff] %vm516, %v540
        %v543 = vld [vmem:[%s3] sm:$0xff]
        %v544 = vld [vmem:[%s3 + $0x8] sm:$0xff]
        %546 = vset.pattern.permute.xlu0 0
        %547 = vperm.xlu0 %546, %v543
        %v548 = vpop.permute.xlu0 %547
        %551 = vset.pattern.permute.xlu0 0
        %552 = vperm.xlu0 %551, %v544
        %v553 = vpop.permute.xlu0 %552
        %v555 = vmul.f32 %v414, %v548
        %v556 = vmul.f32 %v416, %v548
        %v557 = vmul.f32 %v491, %v548
        %v558 = vmul.f32 %v493, %v548
        %v559 = vmul.f32 %v420, %v553
        %v560 = vmul.f32 %v422, %v553
        %v561 = vmul.f32 %v497, %v553
        %v562 = vmul.f32 %v499, %v553
        loop: start=0, step=1, limit=16
        $region49: #{tpu_custom_call.1} parent=35 // loop_pre_header
          _
        $region50: #{tpu_custom_call.1} parent=35 // loop_header
          %s564 = sphi 0, %s568
          %p565 = scmp.ge.s32.totalorder %s564, 16
        $region51: #{tpu_custom_call.1} parent=35 // loop_header_branch
          %567 = sbr.rel (%p565) target = $region55
        $region52: #{tpu_custom_call.1} parent=35 // loop_body
          %s569 = smul.u32 %s564, 8
          %v570 = vlaneseq
          %v571 = vshrl.u32 %v570, 7
          %v572 = vstv %s569
          %v573 = vadd.s32 %v571, %v572
          %v574 = vlaneseq
          %v575 = vshrl.u32 %v574, 7
          %v576 = vsub.s32 0, %v575
          %v577 = vrot.slane %v501, %v576
          %v578 = vlaneseq
          %v579 = vshrl.u32 %v578, 7
          %v580 = vsub.s32 1, %v579
          %v581 = vrot.slane %v501, %v580
          %v582 = vlaneseq
          %v583 = vshrl.u32 %v582, 7
          %v584 = vsub.s32 2, %v583
          %v585 = vrot.slane %v501, %v584
          %v586 = vlaneseq
          %v587 = vshrl.u32 %v586, 7
          %v588 = vsub.s32 3, %v587
          %v589 = vrot.slane %v501, %v588
          %vm590 = vcmp.eq.s32.totalorder %v573, %v577
          %vm591 = vcmp.eq.s32.totalorder %v573, %v581
          %vm592 = vcmp.eq.s32.totalorder %v573, %v585
          %vm593 = vcmp.eq.s32.totalorder %v573, %v589
          %v594 = vsel %vm590, 1, 0
          %v595 = vsel %vm591, 1, 0
          %v596 = vsel %vm592, 1, 0
          %v597 = vsel %vm593, 1, 0
          %v598 = vcombine.low %v594, %v595
          %v599 = vcombine.high %v594, %v595
          %v600 = vcombine.low %v596, %v597
          %v601 = vcombine.high %v596, %v597
          %v603 = vunpack.c.l.s4 1966171168
          %v604 = vunpack.c.0.s8 %v603
          %v605 = vlaneseq
          %v606 = vshrl.u32 %v605, 7
          %v607 = vsub.s32 %v604, %v606
          %v608 = vrot.slane %v598, %v607
          %v610 = vunpack.c.l.s4 1966171168
          %v611 = vunpack.c.0.s8 %v610
          %v612 = vlaneseq
          %v613 = vshrl.u32 %v612, 7
          %v614 = vsub.s32 %v611, %v613
          %v615 = vrot.slane %v599, %v614
          %v617 = vunpack.c.l.s4 1966171168
          %v618 = vunpack.c.0.s8 %v617
          %v619 = vlaneseq
          %v620 = vshrl.u32 %v619, 7
          %v621 = vsub.s32 %v618, %v620
          %v622 = vrot.slane %v600, %v621
          %v624 = vunpack.c.l.s4 1966171168
          %v625 = vunpack.c.0.s8 %v624
          %v626 = vlaneseq
          %v627 = vshrl.u32 %v626, 7
          %v628 = vsub.s32 %v625, %v627
          %v629 = vrot.slane %v601, %v628
          %v630 = vcombine.low %v608, %v622
          %v631 = vcombine.high %v608, %v622
          %v632 = vcombine.low %v615, %v629
          %v633 = vcombine.high %v615, %v629
          %v635 = vunpack.c.l.s4 1966171168
          %v636 = vunpack.c.0.s8 %v635
          %v637 = vlaneseq
          %v638 = vshrl.u32 %v637, 7
          %v639 = vsub.s32 %v636, %v638
          %v640 = vrot.slane %v630, %v639
          %v642 = vunpack.c.l.s4 1966171168
          %v643 = vunpack.c.0.s8 %v642
          %v644 = vlaneseq
          %v645 = vshrl.u32 %v644, 7
          %v646 = vsub.s32 %v643, %v645
          %v647 = vrot.slane %v632, %v646
          %v649 = vunpack.c.l.s4 1966171168
          %v650 = vunpack.c.0.s8 %v649
          %v651 = vlaneseq
          %v652 = vshrl.u32 %v651, 7
          %v653 = vsub.s32 %v650, %v652
          %v654 = vrot.slane %v631, %v653
          %v656 = vunpack.c.l.s4 1966171168
          %v657 = vunpack.c.0.s8 %v656
          %v658 = vlaneseq
          %v659 = vshrl.u32 %v658, 7
          %v660 = vsub.s32 %v657, %v659
          %v661 = vrot.slane %v633, %v660
          %v662 = vcombine.high %v640, %v640
          %v663 = vcombine.high %v647, %v647
          %v664 = vcombine.high %v654, %v654
          %v665 = vcombine.high %v661, %v661
          %vm666 = vcmp.ne.s32.totalorder %v640, 0
          %vm667 = vcmp.ne.s32.totalorder %v654, 0
          %vm668 = vcmp.ne.s32.totalorder %v662, 0
          %vm669 = vcmp.ne.s32.totalorder %v664, 0
          %vm670 = vcmp.ne.s32.totalorder %v647, 0
          %vm671 = vcmp.ne.s32.totalorder %v661, 0
          %vm672 = vcmp.ne.s32.totalorder %v663, 0
          %vm673 = vcmp.ne.s32.totalorder %v665, 0
          %v674 = vsel %vm666, 1, 0
          %v675 = vsel %vm667, 1, 0
          %v676 = vsel %vm668, 1, 0
          %v677 = vsel %vm669, 1, 0
          %v678 = vsel %vm670, 1, 0
          %v679 = vsel %vm671, 1, 0
          %v680 = vsel %vm672, 1, 0
          %v681 = vsel %vm673, 1, 0
          %v682 = vlaneseq
          %v683 = vshrl.u32 %v682, 7
          %v684 = vsub.s32 0, %v683
          %v685 = vrot.slane %v674, %v684
          %v686 = vlaneseq
          %v687 = vshrl.u32 %v686, 7
          %v688 = vsub.s32 1, %v687
          %v689 = vrot.slane %v674, %v688
          %v690 = vlaneseq
          %v691 = vshrl.u32 %v690, 7
          %v692 = vsub.s32 2, %v691
          %v693 = vrot.slane %v674, %v692
          %v694 = vlaneseq
          %v695 = vshrl.u32 %v694, 7
          %v696 = vsub.s32 3, %v695
          %v697 = vrot.slane %v674, %v696
          %v698 = vlaneseq
          %v699 = vshrl.u32 %v698, 7
          %v700 = vsub.s32 0, %v699
          %v701 = vrot.slane %v675, %v700
          %v702 = vlaneseq
          %v703 = vshrl.u32 %v702, 7
          %v704 = vsub.s32 1, %v703
          %v705 = vrot.slane %v675, %v704
          %v706 = vlaneseq
          %v707 = vshrl.u32 %v706, 7
          %v708 = vsub.s32 2, %v707
          %v709 = vrot.slane %v675, %v708
          %v710 = vlaneseq
          %v711 = vshrl.u32 %v710, 7
          %v712 = vsub.s32 3, %v711
          %v713 = vrot.slane %v675, %v712
          %v714 = vlaneseq
          %v715 = vshrl.u32 %v714, 7
          %v716 = vsub.s32 0, %v715
          %v717 = vrot.slane %v676, %v716
          %v718 = vlaneseq
          %v719 = vshrl.u32 %v718, 7
          %v720 = vsub.s32 1, %v719
          %v721 = vrot.slane %v676, %v720
          %v722 = vlaneseq
          %v723 = vshrl.u32 %v722, 7
          %v724 = vsub.s32 2, %v723
          %v725 = vrot.slane %v676, %v724
          %v726 = vlaneseq
          %v727 = vshrl.u32 %v726, 7
          %v728 = vsub.s32 3, %v727
          %v729 = vrot.slane %v676, %v728
          %v730 = vlaneseq
          %v731 = vshrl.u32 %v730, 7
          %v732 = vsub.s32 0, %v731
          %v733 = vrot.slane %v677, %v732
          %v734 = vlaneseq
          %v735 = vshrl.u32 %v734, 7
          %v736 = vsub.s32 1, %v735
          %v737 = vrot.slane %v677, %v736
          %v738 = vlaneseq
          %v739 = vshrl.u32 %v738, 7
          %v740 = vsub.s32 2, %v739
          %v741 = vrot.slane %v677, %v740
          %v742 = vlaneseq
          %v743 = vshrl.u32 %v742, 7
          %v744 = vsub.s32 3, %v743
          %v745 = vrot.slane %v677, %v744
          %v746 = vlaneseq
          %v747 = vshrl.u32 %v746, 7
          %v748 = vsub.s32 0, %v747
          %v749 = vrot.slane %v678, %v748
          %v750 = vlaneseq
          %v751 = vshrl.u32 %v750, 7
          %v752 = vsub.s32 1, %v751
          %v753 = vrot.slane %v678, %v752
          %v754 = vlaneseq
          %v755 = vshrl.u32 %v754, 7
          %v756 = vsub.s32 2, %v755
          %v757 = vrot.slane %v678, %v756
          %v758 = vlaneseq
          %v759 = vshrl.u32 %v758, 7
          %v760 = vsub.s32 3, %v759
          %v761 = vrot.slane %v678, %v760
          %v762 = vlaneseq
          %v763 = vshrl.u32 %v762, 7
          %v764 = vsub.s32 0, %v763
          %v765 = vrot.slane %v679, %v764
          %v766 = vlaneseq
          %v767 = vshrl.u32 %v766, 7
          %v768 = vsub.s32 1, %v767
          %v769 = vrot.slane %v679, %v768
          %v770 = vlaneseq
          %v771 = vshrl.u32 %v770, 7
          %v772 = vsub.s32 2, %v771
          %v773 = vrot.slane %v679, %v772
          %v774 = vlaneseq
          %v775 = vshrl.u32 %v774, 7
          %v776 = vsub.s32 3, %v775
          %v777 = vrot.slane %v679, %v776
          %v778 = vlaneseq
          %v779 = vshrl.u32 %v778, 7
          %v780 = vsub.s32 0, %v779
          %v781 = vrot.slane %v680, %v780
          %v782 = vlaneseq
          %v783 = vshrl.u32 %v782, 7
          %v784 = vsub.s32 1, %v783
          %v785 = vrot.slane %v680, %v784
          %v786 = vlaneseq
          %v787 = vshrl.u32 %v786, 7
          %v788 = vsub.s32 2, %v787
          %v789 = vrot.slane %v680, %v788
          %v790 = vlaneseq
          %v791 = vshrl.u32 %v790, 7
          %v792 = vsub.s32 3, %v791
          %v793 = vrot.slane %v680, %v792
          %v794 = vlaneseq
          %v795 = vshrl.u32 %v794, 7
          %v796 = vsub.s32 0, %v795
          %v797 = vrot.slane %v681, %v796
          %v798 = vlaneseq
          %v799 = vshrl.u32 %v798, 7
          %v800 = vsub.s32 1, %v799
          %v801 = vrot.slane %v681, %v800
          %v802 = vlaneseq
          %v803 = vshrl.u32 %v802, 7
          %v804 = vsub.s32 2, %v803
          %v805 = vrot.slane %v681, %v804
          %v806 = vlaneseq
          %v807 = vshrl.u32 %v806, 7
          %v808 = vsub.s32 3, %v807
          %v809 = vrot.slane %v681, %v808
          %vm810 = vcmp.eq.s32.totalorder %v685, 1
          %vm811 = vcmp.eq.s32.totalorder %v689, 1
          %vm812 = vcmp.eq.s32.totalorder %v693, 1
          %vm813 = vcmp.eq.s32.totalorder %v697, 1
          %vm814 = vcmp.eq.s32.totalorder %v701, 1
          %vm815 = vcmp.eq.s32.totalorder %v705, 1
          %vm816 = vcmp.eq.s32.totalorder %v709, 1
          %vm817 = vcmp.eq.s32.totalorder %v713, 1
          %vm818 = vcmp.eq.s32.totalorder %v717, 1
          %vm819 = vcmp.eq.s32.totalorder %v721, 1
          %vm820 = vcmp.eq.s32.totalorder %v725, 1
          %vm821 = vcmp.eq.s32.totalorder %v729, 1
          %vm822 = vcmp.eq.s32.totalorder %v733, 1
          %vm823 = vcmp.eq.s32.totalorder %v737, 1
          %vm824 = vcmp.eq.s32.totalorder %v741, 1
          %vm825 = vcmp.eq.s32.totalorder %v745, 1
          %vm826 = vcmp.eq.s32.totalorder %v749, 1
          %vm827 = vcmp.eq.s32.totalorder %v753, 1
          %vm828 = vcmp.eq.s32.totalorder %v757, 1
          %vm829 = vcmp.eq.s32.totalorder %v761, 1
          %vm830 = vcmp.eq.s32.totalorder %v765, 1
          %vm831 = vcmp.eq.s32.totalorder %v769, 1
          %vm832 = vcmp.eq.s32.totalorder %v773, 1
          %vm833 = vcmp.eq.s32.totalorder %v777, 1
          %vm834 = vcmp.eq.s32.totalorder %v781, 1
          %vm835 = vcmp.eq.s32.totalorder %v785, 1
          %vm836 = vcmp.eq.s32.totalorder %v789, 1
          %vm837 = vcmp.eq.s32.totalorder %v793, 1
          %vm838 = vcmp.eq.s32.totalorder %v797, 1
          %vm839 = vcmp.eq.s32.totalorder %v801, 1
          %vm840 = vcmp.eq.s32.totalorder %v805, 1
          %vm841 = vcmp.eq.s32.totalorder %v809, 1
          %v842 = vsel %vm810, %v555, -3e+38
          %v843 = vsel %vm811, %v556, -3e+38
          %v844 = vsel %vm812, %v557, -3e+38
          %v845 = vsel %vm813, %v558, -3e+38
          %v846 = vsel %vm810, %v559, -3e+38
          %v847 = vsel %vm811, %v560, -3e+38
          %v848 = vsel %vm812, %v561, -3e+38
          %v849 = vsel %vm813, %v562, -3e+38
          %v850 = vsel %vm814, %v555, -3e+38
          %v851 = vsel %vm815, %v556, -3e+38
          %v852 = vsel %vm816, %v557, -3e+38
          %v853 = vsel %vm817, %v558, -3e+38
          %v854 = vsel %vm814, %v559, -3e+38
          %v855 = vsel %vm815, %v560, -3e+38
          %v856 = vsel %vm816, %v561, -3e+38
          %v857 = vsel %vm817, %v562, -3e+38
          %v858 = vsel %vm818, %v555, -3e+38
          %v859 = vsel %vm819, %v556, -3e+38
          %v860 = vsel %vm820, %v557, -3e+38
          %v861 = vsel %vm821, %v558, -3e+38
          %v862 = vsel %vm818, %v559, -3e+38
          %v863 = vsel %vm819, %v560, -3e+38
          %v864 = vsel %vm820, %v561, -3e+38
          %v865 = vsel %vm821, %v562, -3e+38
          %v866 = vsel %vm822, %v555, -3e+38
          %v867 = vsel %vm823, %v556, -3e+38
          %v868 = vsel %vm824, %v557, -3e+38
          %v869 = vsel %vm825, %v558, -3e+38
          %v870 = vsel %vm822, %v559, -3e+38
          %v871 = vsel %vm823, %v560, -3e+38
          %v872 = vsel %vm824, %v561, -3e+38
          %v873 = vsel %vm825, %v562, -3e+38
          %v874 = vsel %vm826, %v555, -3e+38
          %v875 = vsel %vm827, %v556, -3e+38
          %v876 = vsel %vm828, %v557, -3e+38
          %v877 = vsel %vm829, %v558, -3e+38
          %v878 = vsel %vm826, %v559, -3e+38
          %v879 = vsel %vm827, %v560, -3e+38
          %v880 = vsel %vm828, %v561, -3e+38
          %v881 = vsel %vm829, %v562, -3e+38
          %v882 = vsel %vm830, %v555, -3e+38
          %v883 = vsel %vm831, %v556, -3e+38
          %v884 = vsel %vm832, %v557, -3e+38
          %v885 = vsel %vm833, %v558, -3e+38
          %v886 = vsel %vm830, %v559, -3e+38
          %v887 = vsel %vm831, %v560, -3e+38
          %v888 = vsel %vm832, %v561, -3e+38
          %v889 = vsel %vm833, %v562, -3e+38
          %v890 = vsel %vm834, %v555, -3e+38
          %v891 = vsel %vm835, %v556, -3e+38
          %v892 = vsel %vm836, %v557, -3e+38
          %v893 = vsel %vm837, %v558, -3e+38
          %v894 = vsel %vm834, %v559, -3e+38
          %v895 = vsel %vm835, %v560, -3e+38
          %v896 = vsel %vm836, %v561, -3e+38
          %v897 = vsel %vm837, %v562, -3e+38
          %v898 = vsel %vm838, %v555, -3e+38
          %v899 = vsel %vm839, %v556, -3e+38
          %v900 = vsel %vm840, %v557, -3e+38
          %v901 = vsel %vm841, %v558, -3e+38
          %v902 = vsel %vm838, %v559, -3e+38
          %v903 = vsel %vm839, %v560, -3e+38
          %v904 = vsel %vm840, %v561, -3e+38
          %v905 = vsel %vm841, %v562, -3e+38
          %v906 = vmax.f32 %v842, %v843
          %v907 = vmax.f32 %v906, %v844
          %v908 = vmax.f32 %v907, %v845
          %909 = vmax.xlane.f32.xlu0 %v908
          %v910 = vpop.xlane.xlu0 %909
          %v911 = vmax.f32 %v846, %v847
          %v912 = vmax.f32 %v911, %v848
          %v913 = vmax.f32 %v912, %v849
          %914 = vmax.xlane.f32.xlu0 %v913
          %v915 = vpop.xlane.xlu0 %914
          %v916 = vmax.f32 %v850, %v851
          %v917 = vmax.f32 %v916, %v852
          %v918 = vmax.f32 %v917, %v853
          %919 = vmax.xlane.f32.xlu0 %v918
          %v920 = vpop.xlane.xlu0 %919
          %v921 = vmax.f32 %v854, %v855
          %v922 = vmax.f32 %v921, %v856
          %v923 = vmax.f32 %v922, %v857
          %924 = vmax.xlane.f32.xlu0 %v923
          %v925 = vpop.xlane.xlu0 %924
          %v926 = vmax.f32 %v858, %v859
          %v927 = vmax.f32 %v926, %v860
          %v928 = vmax.f32 %v927, %v861
          %929 = vmax.xlane.f32.xlu0 %v928
          %v930 = vpop.xlane.xlu0 %929
          %v931 = vmax.f32 %v862, %v863
          %v932 = vmax.f32 %v931, %v864
          %v933 = vmax.f32 %v932, %v865
          %934 = vmax.xlane.f32.xlu0 %v933
          %v935 = vpop.xlane.xlu0 %934
          %v936 = vmax.f32 %v866, %v867
          %v937 = vmax.f32 %v936, %v868
          %v938 = vmax.f32 %v937, %v869
          %939 = vmax.xlane.f32.xlu0 %v938
          %v940 = vpop.xlane.xlu0 %939
          %v941 = vmax.f32 %v870, %v871
          %v942 = vmax.f32 %v941, %v872
          %v943 = vmax.f32 %v942, %v873
          %944 = vmax.xlane.f32.xlu0 %v943
          %v945 = vpop.xlane.xlu0 %944
          %v946 = vmax.f32 %v874, %v875
          %v947 = vmax.f32 %v946, %v876
          %v948 = vmax.f32 %v947, %v877
          %949 = vmax.xlane.f32.xlu0 %v948
          %v950 = vpop.xlane.xlu0 %949
          %v951 = vmax.f32 %v878, %v879
          %v952 = vmax.f32 %v951, %v880
          %v953 = vmax.f32 %v952, %v881
          %954 = vmax.xlane.f32.xlu0 %v953
          %v955 = vpop.xlane.xlu0 %954
          %v956 = vmax.f32 %v882, %v883
          %v957 = vmax.f32 %v956, %v884
          %v958 = vmax.f32 %v957, %v885
          %959 = vmax.xlane.f32.xlu0 %v958
          %v960 = vpop.xlane.xlu0 %959
          %v961 = vmax.f32 %v886, %v887
          %v962 = vmax.f32 %v961, %v888
          %v963 = vmax.f32 %v962, %v889
          %964 = vmax.xlane.f32.xlu0 %v963
          %v965 = vpop.xlane.xlu0 %964
          %v966 = vmax.f32 %v890, %v891
          %v967 = vmax.f32 %v966, %v892
          %v968 = vmax.f32 %v967, %v893
          %969 = vmax.xlane.f32.xlu0 %v968
          %v970 = vpop.xlane.xlu0 %969
          %v971 = vmax.f32 %v894, %v895
          %v972 = vmax.f32 %v971, %v896
          %v973 = vmax.f32 %v972, %v897
          %974 = vmax.xlane.f32.xlu0 %v973
          %v975 = vpop.xlane.xlu0 %974
          %v976 = vmax.f32 %v898, %v899
          %v977 = vmax.f32 %v976, %v900
          %v978 = vmax.f32 %v977, %v901
          %979 = vmax.xlane.f32.xlu0 %v978
          %v980 = vpop.xlane.xlu0 %979
          %v981 = vmax.f32 %v902, %v903
          %v982 = vmax.f32 %v981, %v904
          %v983 = vmax.f32 %v982, %v905
          %984 = vmax.xlane.f32.xlu0 %v983
          %v985 = vpop.xlane.xlu0 %984
          %s986 = scalar_lea.vmem %s6, %s569
          %v987 = vld [vmem:[%s986] sm:$0xff]
          %v1004 = vlaneseq
          %v1005 = vand.u32 %v1004, 127
          %v1006 = vlaneseq
          %v1007 = vshrl.u32 %v1006, 7
          %v1008 = vsub.s32 %v1005, %v1007
          %v1009 = vrot.slane %v910, %v1008
          %v1010 = vadd.s32 %v1005, 4294967288
          %v1011 = vlaneseq
          %v1012 = vshrl.u32 %v1011, 7
          %v1013 = vsub.s32 %v1010, %v1012
          %v1014 = vrot.slane %v915, %v1013
          %vm1015 = vcmask 130112
          %v1016 = vsel %vm1015, %v1014, %v1009
          %v1017 = vlaneseq
          %v1018 = vshrl.u32 %v1017, 7
          %v1019 = vsub.s32 %v1005, %v1018
          %v1020 = vrot.slane %v920, %v1019
          %v1021 = vlaneseq
          %v1022 = vshrl.u32 %v1021, 7
          %v1023 = vsub.s32 %v1010, %v1022
          %v1024 = vrot.slane %v925, %v1023
          %v1025 = vsel %vm1015, %v1024, %v1020
          %v1026 = vlaneseq
          %v1027 = vshrl.u32 %v1026, 7
          %v1028 = vsub.s32 %v1005, %v1027
          %v1029 = vrot.slane %v930, %v1028
          %v1030 = vlaneseq
          %v1031 = vshrl.u32 %v1030, 7
          %v1032 = vsub.s32 %v1010, %v1031
          %v1033 = vrot.slane %v935, %v1032
          %v1034 = vsel %vm1015, %v1033, %v1029
          %v1035 = vlaneseq
          %v1036 = vshrl.u32 %v1035, 7
          %v1037 = vsub.s32 %v1005, %v1036
          %v1038 = vrot.slane %v940, %v1037
          %v1039 = vlaneseq
          %v1040 = vshrl.u32 %v1039, 7
          %v1041 = vsub.s32 %v1010, %v1040
          %v1042 = vrot.slane %v945, %v1041
          %v1043 = vsel %vm1015, %v1042, %v1038
          %v1044 = vlaneseq
          %v1045 = vshrl.u32 %v1044, 7
          %v1046 = vsub.s32 %v1005, %v1045
          %v1047 = vrot.slane %v950, %v1046
          %v1048 = vlaneseq
          %v1049 = vshrl.u32 %v1048, 7
          %v1050 = vsub.s32 %v1010, %v1049
          %v1051 = vrot.slane %v955, %v1050
          %v1052 = vsel %vm1015, %v1051, %v1047
          %v1053 = vlaneseq
          %v1054 = vshrl.u32 %v1053, 7
          %v1055 = vsub.s32 %v1005, %v1054
          %v1056 = vrot.slane %v960, %v1055
          %v1057 = vlaneseq
          %v1058 = vshrl.u32 %v1057, 7
          %v1059 = vsub.s32 %v1010, %v1058
          %v1060 = vrot.slane %v965, %v1059
          %v1061 = vsel %vm1015, %v1060, %v1056
          %v1062 = vlaneseq
          %v1063 = vshrl.u32 %v1062, 7
          %v1064 = vsub.s32 %v1005, %v1063
          %v1065 = vrot.slane %v970, %v1064
          %v1066 = vlaneseq
          %v1067 = vshrl.u32 %v1066, 7
          %v1068 = vsub.s32 %v1010, %v1067
          %v1069 = vrot.slane %v975, %v1068
          %v1070 = vsel %vm1015, %v1069, %v1065
          %v1071 = vlaneseq
          %v1072 = vshrl.u32 %v1071, 7
          %v1073 = vsub.s32 %v1005, %v1072
          %v1074 = vrot.slane %v980, %v1073
          %v1075 = vlaneseq
          %v1076 = vshrl.u32 %v1075, 7
          %v1077 = vsub.s32 %v1010, %v1076
          %v1078 = vrot.slane %v985, %v1077
          %v1079 = vsel %vm1015, %v1078, %v1074
          %vm1080 = vcmask 1041409
          %v1081 = vsel %vm1080, %v1025, %v1016
          %vm1082 = vcmask 1042434
          %v1083 = vsel %vm1082, %v1034, %v1081
          %vm1084 = vcmask 1043459
          %v1085 = vsel %vm1084, %v1043, %v1083
          %vm1086 = vcmask 1044484
          %v1087 = vsel %vm1086, %v1052, %v1085
          %vm1088 = vcmask 1045509
          %v1089 = vsel %vm1088, %v1061, %v1087
          %vm1090 = vcmask 1046534
          %v1091 = vsel %vm1090, %v1070, %v1089
          %vm1092 = vcmask 1047559
          %v1093 = vsel %vm1092, %v1079, %v1091
          %v1095 = vmax.f32 %v987, %v1093
          %vm1096 = vcmask 130048
          %1097 = vst.msk [vmem:[%s986] sm:$0xff] %vm1096, %v1095
        $region53: #{tpu_custom_call.1} parent=35 // loop_footer
          %s568 = sadd.s32 1, %s564
        $region54: #{tpu_custom_call.1} parent=35 // loop_footer_branch
          %563 = sbr.rel target = $region50
        $region55: #{tpu_custom_call.1} parent=35 // loop_exit
          _
        // Predicated region
        $region56: #{tpu_custom_call.1} parent=35 // pred_check
          %p1098 = pneg %p129
        $region57: #{tpu_custom_call.1} parent=35 // pred_check_branch
          %1100 = sbr.rel (%p1098) target = $region59
        $region58: #{tpu_custom_call.1} parent=35 // pred_region
          _
        $region59: #{tpu_custom_call.1} parent=35 // pred_fallthru
          _
        // Predicated region
        $region60: #{tpu_custom_call.1} parent=35 // pred_check
          %p1101 = pneg %p150
        $region61: #{tpu_custom_call.1} parent=35 // pred_check_branch
          %1103 = sbr.rel (%p1101) target = $region63
        $region62: #{tpu_custom_call.1} parent=35 // pred_region
          _
        $region63: #{tpu_custom_call.1} parent=35 // pred_fallthru
          _
        // Predicated region
        $region64: #{tpu_custom_call.1} parent=35 // pred_check
          %p1104 = pneg %p171
        $region65: #{tpu_custom_call.1} parent=35 // pred_check_branch
          %1106 = sbr.rel (%p1104) target = $region67
        $region66: #{tpu_custom_call.1} parent=35 // pred_region
          _
        $region67: #{tpu_custom_call.1} parent=35 // pred_fallthru
          _
        // Predicated region
        $region68: #{tpu_custom_call.1} parent=35 // pred_check
          %p1107 = pneg %p129
        $region69: #{tpu_custom_call.1} parent=35 // pred_check_branch
          %1109 = sbr.rel (%p1107) target = $region71
        $region70: #{tpu_custom_call.1} parent=35 // pred_region
          _
        $region71: #{tpu_custom_call.1} parent=35 // pred_fallthru
          _
        // Predicated region
        $region72: #{tpu_custom_call.1} parent=35 // pred_check
          %p1110 = pneg %p150
        $region73: #{tpu_custom_call.1} parent=35 // pred_check_branch
          %1112 = sbr.rel (%p1110) target = $region75
        $region74: #{tpu_custom_call.1} parent=35 // pred_region
          _
        $region75: #{tpu_custom_call.1} parent=35 // pred_fallthru
          _
        // Predicated region
        $region76: #{tpu_custom_call.1} parent=35 // pred_check
          %p1113 = pneg %p171
        $region77: #{tpu_custom_call.1} parent=35 // pred_check_branch
          %1115 = sbr.rel (%p1113) target = $region79
        $region78: #{tpu_custom_call.1} parent=35 // pred_region
          _
        $region79: #{tpu_custom_call.1} parent=35 // pred_fallthru
          _
      $region36: #{tpu_custom_call.1} parent=5 // pred_fallthru
        _
      %p1116 = scmp.le.s32.totalorder 2, %s17
      // Predicated region
      $region80: #{tpu_custom_call.1} parent=5 // pred_check
        %p1117 = pneg %p1116
      $region81: #{tpu_custom_call.1} parent=5 // pred_check_branch
        %1119 = sbr.rel (%p1117) target = $region83
      $region82: #{tpu_custom_call.1} parent=5 // pred_region
        %s1120 = ssub.s32 %s17, 2
      $region83: #{tpu_custom_call.1} parent=5 // pred_fallthru
        _
    $region6: #{tpu_custom_call.1} parent=1 // loop_footer
      %s21 = sadd.s32 1, %s17
    $region7: #{tpu_custom_call.1} parent=1 // loop_footer_branch
      %16 = sbr.rel target = $region3
    $region8: #{tpu_custom_call.1} parent=1 // loop_exit
      _
    %1121 = vsyncpa [#allocation3], 1
    %s1122 = scalar_lea.sflag [#allocation3], 1
    %1123 = vsyncpa %s1122, 1
    %1124 = vsyncpa [#allocation5], 1

</llo_original>
